<compile_context>
chip_gen: v6e
topology: v6e:2x2x1
jax: 0.10.0
libtpu: 0.0.40
codegen_flags: <defaults>
</compile_context>

<pallas_src>
import jax
import jax.numpy as jnp
from jax.experimental import pallas as pl
from jax.experimental.pallas import tpu as pltpu


def _make_residual_kernel(H, W, Cin):
    HW = H * W
    P = W + 1  # one-sided zero pad in the flattened (H*W) lane domain

    def kernel(x_ref, w1_ref, b1_ref, w2_ref, b2_ref, o_ref, patch_ref):
        # x_ref    : (Cin, H*W)    one batch element, NCHW flattened, pre-relu
        # w1_ref   : (Ch, 9*Cin)   conv1 weights, columns ordered (dy, dx, cin)
        # b1_ref   : (Ch, 1)
        # w2_ref   : (Cout, Ch)    conv2 (1x1) weights
        # b2_ref   : (Cout, 1)
        # o_ref    : (Cout, H*W)
        # patch_ref: (9*Cin, H*W)  VMEM scratch holding the im2col patches
        x = x_ref[...]                                    # pre-relu (residual)
        xr = jnp.maximum(x, 0.0)                          # relu(x) for the convs

        # Zero-pad the flattened spatial axis by W+1 on both sides so every 3x3
        # tap is a contiguous length-H*W lane slice; positions that fall outside
        # the image in y automatically read the zero pad.
        zpad = jnp.zeros((Cin, P), xr.dtype)
        xp = jnp.concatenate([zpad, xr, zpad], axis=1)    # (Cin, H*W + 2*(W+1))

        # x-border masks (kill bleed from neighbouring rows when shifting in x).
        col = jax.lax.broadcasted_iota(jnp.int32, (1, HW), 1) % W
        mask_left = col >= 1            # tap dx=0 needs x-1 >= 0
        mask_right = col < (W - 1)      # tap dx=2 needs x+1 <  W

        # im2col: pack the 9 shifted windows into the (9*Cin, H*W) scratch.
        for dy in range(3):
            for dx in range(3):
                t = dy * 3 + dx
                s = P + (dy - 1) * W + (dx - 1)
                win = xp[:, s:s + HW]                     # (Cin, H*W)
                if dx == 0:
                    win = jnp.where(mask_left, win, 0.0)
                elif dx == 2:
                    win = jnp.where(mask_right, win, 0.0)
                patch_ref[t * Cin:(t + 1) * Cin, :] = win

        patches = patch_ref[...]                          # (9*Cin, H*W)

        # conv1 (3x3) as one K = 9*Cin matmul, then bias + relu.
        h = jnp.dot(w1_ref[...], patches,
                    preferred_element_type=jnp.float32)   # (Ch, H*W)
        h = jnp.maximum(h + b1_ref[...], 0.0)

        # conv2 (1x1) as a plain matmul, bias, residual add.
        out = jnp.dot(w2_ref[...], h,
                      preferred_element_type=jnp.float32) + b2_ref[...]
        o_ref[...] = (x + out).astype(o_ref.dtype)

    return kernel


def residual_forward_nchw(x_nchw, w1, b1, w2, b2):
    """x_nchw: (N, Cin, H, W).  w1: (3,3,Cin,Ch) HWIO.  w2: (Ch, Cout)."""
    N, Cin, H, W = x_nchw.shape
    Ch = w1.shape[-1]
    Cout = w2.shape[-1]
    assert Cout == Cin, "residual add requires hidden_dim == in_channels"
    HW = H * W

    # Free reshape: keep NCHW, flatten spatial dims onto the lane axis.
    x_flat = x_nchw.reshape(N, Cin, HW)

    # One-time tiny weight repack: conv1 -> (Ch, 9*Cin), columns ordered
    # (dy, dx, cin) to match the in-kernel im2col; conv2 -> (Cout, Ch).
    w1k = jnp.transpose(w1, (3, 0, 1, 2)).reshape(Ch, 9 * Cin)
    b1k = b1.reshape(Ch, 1)
    w2k = jnp.transpose(w2, (1, 0))
    b2k = b2.reshape(Cout, 1)

    kernel = _make_residual_kernel(H, W, Cin)

    flops = 2 * N * HW * (9 * Cin * Ch + Ch * Cout)
    bytes_accessed = 4 * (N * Cin * HW + N * Cout * HW
                          + 9 * Cin * Ch + Ch + Ch * Cout + Cout)

    out = pl.pallas_call(
        kernel,
        out_shape=jax.ShapeDtypeStruct((N, Cout, HW), x_nchw.dtype),
        grid_spec=pltpu.PrefetchScalarGridSpec(
            num_scalar_prefetch=0,
            grid=(N,),
            in_specs=[
                pl.BlockSpec((None, Cin, HW), lambda n: (n, 0, 0)),
                pl.BlockSpec((Ch, 9 * Cin), lambda n: (0, 0)),
                pl.BlockSpec((Ch, 1), lambda n: (0, 0)),
                pl.BlockSpec((Cout, Ch), lambda n: (0, 0)),
                pl.BlockSpec((Cout, 1), lambda n: (0, 0)),
            ],
            out_specs=pl.BlockSpec((None, Cout, HW), lambda n: (n, 0, 0)),
            scratch_shapes=[pltpu.VMEM((9 * Cin, HW), jnp.float32)],
        ),
        compiler_params=pltpu.CompilerParams(
            dimension_semantics=("parallel",)),
        cost_estimate=pl.CostEstimate(
            flops=flops, transcendentals=0, bytes_accessed=bytes_accessed),
    )(x_flat, w1k, b1k, w2k, b2k)

    return out.reshape(N, Cout, H, W)   # free reshape back to NCHW


def reference_forward_nchw(x_nchw, w1, b1, w2, b2):
    """Pure-JAX reference (NHWC convs) for the correctness check."""
    x = jnp.transpose(x_nchw, (0, 2, 3, 1))
    h = jnp.maximum(x, 0.0)
    h = jax.lax.conv_general_dilated(
        h, w1, window_strides=(1, 1), padding="SAME",
        dimension_numbers=("NHWC", "HWIO", "NHWC")) + b1
    h = jnp.maximum(h, 0.0)
    h = jax.lax.conv_general_dilated(
        h, w2.reshape(1, 1, *w2.shape), window_strides=(1, 1), padding="VALID",
        dimension_numbers=("NHWC", "HWIO", "NHWC")) + b2
    out = x + h
    return jnp.transpose(out, (0, 3, 1, 2))


if __name__ == "__main__":
    # Residual(in_channels=4, hidden_dim=4, num_residual_hiddens=8)
    N, Cin, H, W = 2, 4, 16, 16
    Ch = 8          # num_residual_hiddens
    Cout = Cin      # hidden_dim == in_channels for the residual add

    key = jax.random.PRNGKey(0)
    kx, kw1, kb1, kw2, kb2 = jax.random.split(key, 5)
    x = jax.random.normal(kx, (N, Cin, H, W), dtype=jnp.float32)
    w1 = jax.random.normal(kw1, (3, 3, Cin, Ch), dtype=jnp.float32) * 0.1
    b1 = jax.random.normal(kb1, (Ch,), dtype=jnp.float32) * 0.1
    w2 = jax.random.normal(kw2, (Ch, Cout), dtype=jnp.float32) * 0.1
    b2 = jax.random.normal(kb2, (Cout,), dtype=jnp.float32) * 0.1

    out = residual_forward_nchw(x, w1, b1, w2, b2)
    out = jax.block_until_ready(out)

    ref = reference_forward_nchw(x, w1, b1, w2, b2)
    assert out.shape == (N, Cin, H, W)
    assert jnp.allclose(out, ref, atol=1e-4, rtol=1e-4)

    print("KERNEL_OK")
</pallas_src>

<mosaic_0001>
module attributes {stable_mosaic.version = 11 : i64} {
  func.func @kernel(%arg0: i32, %arg1: memref<1x4x256xf32, #tpu.memory_space<vmem>>, %arg2: memref<8x36xf32, #tpu.memory_space<vmem>>, %arg3: memref<8x1xf32, #tpu.memory_space<vmem>>, %arg4: memref<4x8xf32, #tpu.memory_space<vmem>>, %arg5: memref<4x1xf32, #tpu.memory_space<vmem>>, %arg6: memref<1x4x256xf32, #tpu.memory_space<vmem>>, %arg7: memref<36x256xf32, #tpu.memory_space<vmem>>) attributes {dimension_semantics = [#tpu.dimension_semantics<parallel>], iteration_bounds = array<i64: 2>, scalar_prefetch = 0 : i64, scratch_operands = 1 : i64, tpu.core_type = #tpu.core_type<tc>, window_params = [{transform_indices = @transform_0, window_bounds = array<i64: 1, 4, 256>}, {pipeline_mode = #tpu.pipeline_mode<synchronous>, transform_indices = @transform_1, window_bounds = array<i64: 8, 36>}, {pipeline_mode = #tpu.pipeline_mode<synchronous>, transform_indices = @transform_2, window_bounds = array<i64: 8, 1>}, {pipeline_mode = #tpu.pipeline_mode<synchronous>, transform_indices = @transform_3, window_bounds = array<i64: 4, 8>}, {pipeline_mode = #tpu.pipeline_mode<synchronous>, transform_indices = @transform_4, window_bounds = array<i64: 4, 1>}, {transform_indices = @transform_5, window_bounds = array<i64: 1, 4, 256>}]} {
    %c0 = arith.constant 0 : index
    %c0_0 = arith.constant 0 : index
    %c0_1 = arith.constant 0 : index
    %0 = vector.load %arg1[%c0, %c0_0, %c0_1] : memref<1x4x256xf32, #tpu.memory_space<vmem>>, vector<1x4x256xf32>
    %1 = vector.shape_cast %0 : vector<1x4x256xf32> to vector<4x256xf32>
    %cst = arith.constant 0.000000e+00 : f32
    %2 = vector.broadcast %cst : f32 to vector<4x256xf32>
    %3 = arith.maximumf %1, %2 : vector<4x256xf32>
    %cst_2 = arith.constant 0.000000e+00 : f32
    %4 = vector.broadcast %cst_2 : f32 to vector<4x17xf32>
    %5 = tpu.concatenate %4, %3, %4 in 1 : vector<4x17xf32>, vector<4x256xf32>, vector<4x17xf32> -> vector<4x290xf32>
    %6 = tpu.iota {dimensions = array<i32: 1>} : vector<1x256xi32>
    %c16_i32 = arith.constant 16 : i32
    %c0_i32 = arith.constant 0 : i32
    %7 = arith.cmpi eq, %c16_i32, %c0_i32 : i32
    %c1_i32 = arith.constant 1 : i32
    %8 = arith.select %7, %c1_i32, %c16_i32 : i32
    %9 = vector.broadcast %8 : i32 to vector<1x256xi32>
    %10 = arith.remsi %6, %9 : vector<1x256xi32>
    %c0_i32_3 = arith.constant 0 : i32
    %11 = vector.broadcast %c0_i32_3 : i32 to vector<1x256xi32>
    %12 = arith.cmpi ne, %10, %11 : vector<1x256xi32>
    %c0_i32_4 = arith.constant 0 : i32
    %13 = vector.broadcast %c0_i32_4 : i32 to vector<1x256xi32>
    %14 = arith.cmpi slt, %10, %13 : vector<1x256xi32>
    %c0_i32_5 = arith.constant 0 : i32
    %15 = arith.cmpi slt, %8, %c0_i32_5 : i32
    %16 = vector.broadcast %15 : i1 to vector<1x256xi1>
    %17 = vector.broadcast %16 : vector<1x256xi1> to vector<1x256xi1>
    %18 = arith.xori %14, %17 : vector<1x256xi1>
    %19 = arith.andi %18, %12 : vector<1x256xi1>
    %20 = vector.broadcast %8 : i32 to vector<1x256xi32>
    %21 = arith.addi %10, %20 : vector<1x256xi32>
    %22 = arith.select %19, %21, %10 : vector<1x256xi1>, vector<1x256xi32>
    %c1_i32_6 = arith.constant 1 : i32
    %23 = vector.broadcast %c1_i32_6 : i32 to vector<1x256xi32>
    %24 = arith.cmpi sge, %22, %23 : vector<1x256xi32>
    %c15_i32 = arith.constant 15 : i32
    %25 = vector.broadcast %c15_i32 : i32 to vector<1x256xi32>
    %26 = arith.cmpi slt, %22, %25 : vector<1x256xi32>
    %27 = vector.extract_strided_slice %5 {offsets = [0, 0], sizes = [4, 256], strides = [1, 1]} : vector<4x290xf32> to vector<4x256xf32>
    %cst_7 = arith.constant 0.000000e+00 : f32
    %28 = vector.shape_cast %24 : vector<1x256xi1> to vector<1x256xi1>
    %29 = vector.broadcast %28 : vector<1x256xi1> to vector<4x256xi1>
    %30 = vector.broadcast %cst_7 : f32 to vector<4x256xf32>
    %31 = arith.select %29, %27, %30 : vector<4x256xi1>, vector<4x256xf32>
    %c0_8 = arith.constant 0 : index
    %c0_9 = arith.constant 0 : index
    %32 = vector.load %arg7[%c0_8, %c0_9] : memref<36x256xf32, #tpu.memory_space<vmem>>, vector<4x256xf32>
    tpu.vector_store %arg7[%c0_8, %c0_9], %31 {strides = array<i32>} : memref<36x256xf32, #tpu.memory_space<vmem>>, vector<4x256xf32>,
    %33 = vector.extract_strided_slice %5 {offsets = [0, 1], sizes = [4, 256], strides = [1, 1]} : vector<4x290xf32> to vector<4x256xf32>
    %c4 = arith.constant 4 : index
    %c0_10 = arith.constant 0 : index
    %34 = vector.load %arg7[%c4, %c0_10] : memref<36x256xf32, #tpu.memory_space<vmem>>, vector<4x256xf32>
    tpu.vector_store %arg7[%c4, %c0_10], %33 {strides = array<i32>} : memref<36x256xf32, #tpu.memory_space<vmem>>, vector<4x256xf32>,
    %35 = vector.extract_strided_slice %5 {offsets = [0, 2], sizes = [4, 256], strides = [1, 1]} : vector<4x290xf32> to vector<4x256xf32>
    %cst_11 = arith.constant 0.000000e+00 : f32
    %36 = vector.shape_cast %26 : vector<1x256xi1> to vector<1x256xi1>
    %37 = vector.broadcast %36 : vector<1x256xi1> to vector<4x256xi1>
    %38 = vector.broadcast %cst_11 : f32 to vector<4x256xf32>
    %39 = arith.select %37, %35, %38 : vector<4x256xi1>, vector<4x256xf32>
    %c8 = arith.constant 8 : index
    %c0_12 = arith.constant 0 : index
    %40 = vector.load %arg7[%c8, %c0_12] : memref<36x256xf32, #tpu.memory_space<vmem>>, vector<4x256xf32>
    tpu.vector_store %arg7[%c8, %c0_12], %39 {strides = array<i32>} : memref<36x256xf32, #tpu.memory_space<vmem>>, vector<4x256xf32>,
    %41 = vector.extract_strided_slice %5 {offsets = [0, 16], sizes = [4, 256], strides = [1, 1]} : vector<4x290xf32> to vector<4x256xf32>
    %cst_13 = arith.constant 0.000000e+00 : f32
    %42 = vector.shape_cast %24 : vector<1x256xi1> to vector<1x256xi1>
    %43 = vector.broadcast %42 : vector<1x256xi1> to vector<4x256xi1>
    %44 = vector.broadcast %cst_13 : f32 to vector<4x256xf32>
    %45 = arith.select %43, %41, %44 : vector<4x256xi1>, vector<4x256xf32>
    %c12 = arith.constant 12 : index
    %c0_14 = arith.constant 0 : index
    %46 = vector.load %arg7[%c12, %c0_14] : memref<36x256xf32, #tpu.memory_space<vmem>>, vector<4x256xf32>
    tpu.vector_store %arg7[%c12, %c0_14], %45 {strides = array<i32>} : memref<36x256xf32, #tpu.memory_space<vmem>>, vector<4x256xf32>,
    %47 = vector.extract_strided_slice %5 {offsets = [0, 17], sizes = [4, 256], strides = [1, 1]} : vector<4x290xf32> to vector<4x256xf32>
    %c16 = arith.constant 16 : index
    %c0_15 = arith.constant 0 : index
    %48 = vector.load %arg7[%c16, %c0_15] : memref<36x256xf32, #tpu.memory_space<vmem>>, vector<4x256xf32>
    tpu.vector_store %arg7[%c16, %c0_15], %47 {strides = array<i32>} : memref<36x256xf32, #tpu.memory_space<vmem>>, vector<4x256xf32>,
    %49 = vector.extract_strided_slice %5 {offsets = [0, 18], sizes = [4, 256], strides = [1, 1]} : vector<4x290xf32> to vector<4x256xf32>
    %cst_16 = arith.constant 0.000000e+00 : f32
    %50 = vector.shape_cast %26 : vector<1x256xi1> to vector<1x256xi1>
    %51 = vector.broadcast %50 : vector<1x256xi1> to vector<4x256xi1>
    %52 = vector.broadcast %cst_16 : f32 to vector<4x256xf32>
    %53 = arith.select %51, %49, %52 : vector<4x256xi1>, vector<4x256xf32>
    %c20 = arith.constant 20 : index
    %c0_17 = arith.constant 0 : index
    %54 = vector.load %arg7[%c20, %c0_17] : memref<36x256xf32, #tpu.memory_space<vmem>>, vector<4x256xf32>
    tpu.vector_store %arg7[%c20, %c0_17], %53 {strides = array<i32>} : memref<36x256xf32, #tpu.memory_space<vmem>>, vector<4x256xf32>,
    %55 = vector.extract_strided_slice %5 {offsets = [0, 32], sizes = [4, 256], strides = [1, 1]} : vector<4x290xf32> to vector<4x256xf32>
    %cst_18 = arith.constant 0.000000e+00 : f32
    %56 = vector.shape_cast %24 : vector<1x256xi1> to vector<1x256xi1>
    %57 = vector.broadcast %56 : vector<1x256xi1> to vector<4x256xi1>
    %58 = vector.broadcast %cst_18 : f32 to vector<4x256xf32>
    %59 = arith.select %57, %55, %58 : vector<4x256xi1>, vector<4x256xf32>
    %c24 = arith.constant 24 : index
    %c0_19 = arith.constant 0 : index
    %60 = vector.load %arg7[%c24, %c0_19] : memref<36x256xf32, #tpu.memory_space<vmem>>, vector<4x256xf32>
    tpu.vector_store %arg7[%c24, %c0_19], %59 {strides = array<i32>} : memref<36x256xf32, #tpu.memory_space<vmem>>, vector<4x256xf32>,
    %61 = vector.extract_strided_slice %5 {offsets = [0, 33], sizes = [4, 256], strides = [1, 1]} : vector<4x290xf32> to vector<4x256xf32>
    %c28 = arith.constant 28 : index
    %c0_20 = arith.constant 0 : index
    %62 = vector.load %arg7[%c28, %c0_20] : memref<36x256xf32, #tpu.memory_space<vmem>>, vector<4x256xf32>
    tpu.vector_store %arg7[%c28, %c0_20], %61 {strides = array<i32>} : memref<36x256xf32, #tpu.memory_space<vmem>>, vector<4x256xf32>,
    %63 = vector.extract_strided_slice %5 {offsets = [0, 34], sizes = [4, 256], strides = [1, 1]} : vector<4x290xf32> to vector<4x256xf32>
    %cst_21 = arith.constant 0.000000e+00 : f32
    %64 = vector.shape_cast %26 : vector<1x256xi1> to vector<1x256xi1>
    %65 = vector.broadcast %64 : vector<1x256xi1> to vector<4x256xi1>
    %66 = vector.broadcast %cst_21 : f32 to vector<4x256xf32>
    %67 = arith.select %65, %63, %66 : vector<4x256xi1>, vector<4x256xf32>
    %c32 = arith.constant 32 : index
    %c0_22 = arith.constant 0 : index
    %68 = vector.load %arg7[%c32, %c0_22] : memref<36x256xf32, #tpu.memory_space<vmem>>, vector<4x256xf32>
    tpu.vector_store %arg7[%c32, %c0_22], %67 {strides = array<i32>} : memref<36x256xf32, #tpu.memory_space<vmem>>, vector<4x256xf32>,
    %c0_23 = arith.constant 0 : index
    %c0_24 = arith.constant 0 : index
    %69 = vector.load %arg7[%c0_23, %c0_24] : memref<36x256xf32, #tpu.memory_space<vmem>>, vector<36x256xf32>
    %c0_25 = arith.constant 0 : index
    %c0_26 = arith.constant 0 : index
    %70 = vector.load %arg2[%c0_25, %c0_26] : memref<8x36xf32, #tpu.memory_space<vmem>>, vector<8x36xf32>
    %cst_27 = arith.constant dense<0.000000e+00> : vector<8x256xf32>
    %71 = tpu.matmul %70, %69, %cst_27 {dimension_numbers = #tpu.dot_dimension_numbers<[1], [0], [0], [1], [0, 0, 1, 1], [], []>} : vector<8x36xf32>, vector<36x256xf32>, vector<8x256xf32> -> vector<8x256xf32>
    %c0_28 = arith.constant 0 : index
    %c0_29 = arith.constant 0 : index
    %72 = vector.load %arg3[%c0_28, %c0_29] : memref<8x1xf32, #tpu.memory_space<vmem>>, vector<8x1xf32>
    %73 = vector.broadcast %72 : vector<8x1xf32> to vector<8x256xf32>
    %74 = arith.addf %71, %73 : vector<8x256xf32>
    %cst_30 = arith.constant 0.000000e+00 : f32
    %75 = vector.broadcast %cst_30 : f32 to vector<8x256xf32>
    %76 = arith.maximumf %74, %75 : vector<8x256xf32>
    %c0_31 = arith.constant 0 : index
    %c0_32 = arith.constant 0 : index
    %77 = vector.load %arg4[%c0_31, %c0_32] : memref<4x8xf32, #tpu.memory_space<vmem>>, vector<4x8xf32>
    %cst_33 = arith.constant dense<0.000000e+00> : vector<4x256xf32>
    %78 = tpu.matmul %77, %76, %cst_33 {dimension_numbers = #tpu.dot_dimension_numbers<[1], [0], [0], [1], [0, 0, 1, 1], [], []>} : vector<4x8xf32>, vector<8x256xf32>, vector<4x256xf32> -> vector<4x256xf32>
    %c0_34 = arith.constant 0 : index
    %c0_35 = arith.constant 0 : index
    %79 = vector.load %arg5[%c0_34, %c0_35] : memref<4x1xf32, #tpu.memory_space<vmem>>, vector<4x1xf32>
    %80 = vector.broadcast %79 : vector<4x1xf32> to vector<4x256xf32>
    %81 = arith.addf %78, %80 : vector<4x256xf32>
    %82 = arith.addf %1, %81 : vector<4x256xf32>
    %c0_36 = arith.constant 0 : index
    %c0_37 = arith.constant 0 : index
    %c0_38 = arith.constant 0 : index
    %83 = vector.load %arg6[%c0_36, %c0_37, %c0_38] : memref<1x4x256xf32, #tpu.memory_space<vmem>>, vector<1x4x256xf32>
    %84 = vector.shape_cast %83 : vector<1x4x256xf32> to vector<4x256xf32>
    %85 = vector.shape_cast %82 : vector<4x256xf32> to vector<1x4x256xf32>
    tpu.vector_store %arg6[%c0_36, %c0_37, %c0_38], %85 {strides = array<i32>} : memref<1x4x256xf32, #tpu.memory_space<vmem>>, vector<1x4x256xf32>,
    return
  }
  func.func @transform_0(%arg0: i32) -> (i32, i32, i32) {
    %c0_i32 = arith.constant 0 : i32
    %c0_i32_0 = arith.constant 0 : i32
    %c0_i32_1 = arith.constant 0 : i32
    return %arg0, %c0_i32, %c0_i32_0 : i32, i32, i32
  }
  func.func @transform_1(%arg0: i32) -> (i32, i32) {
    %c0_i32 = arith.constant 0 : i32
    %c0_i32_0 = arith.constant 0 : i32
    %c0_i32_1 = arith.constant 0 : i32
    return %c0_i32, %c0_i32_0 : i32, i32
  }
  func.func @transform_2(%arg0: i32) -> (i32, i32) {
    %c0_i32 = arith.constant 0 : i32
    %c0_i32_0 = arith.constant 0 : i32
    %c0_i32_1 = arith.constant 0 : i32
    return %c0_i32, %c0_i32_0 : i32, i32
  }
  func.func @transform_3(%arg0: i32) -> (i32, i32) {
    %c0_i32 = arith.constant 0 : i32
    %c0_i32_0 = arith.constant 0 : i32
    %c0_i32_1 = arith.constant 0 : i32
    return %c0_i32, %c0_i32_0 : i32, i32
  }
  func.func @transform_4(%arg0: i32) -> (i32, i32) {
    %c0_i32 = arith.constant 0 : i32
    %c0_i32_0 = arith.constant 0 : i32
    %c0_i32_1 = arith.constant 0 : i32
    return %c0_i32, %c0_i32_0 : i32, i32
  }
  func.func @transform_5(%arg0: i32) -> (i32, i32, i32) {
    %c0_i32 = arith.constant 0 : i32
    %c0_i32_0 = arith.constant 0 : i32
    %c0_i32_1 = arith.constant 0 : i32
    return %arg0, %c0_i32, %c0_i32_0 : i32, i32, i32
  }
}

</mosaic_0001>

<llo_original>
// kernel: tpu_custom_call.1
$region0: #{tpu_custom_call.1}
  #allocation0 [shape = 'u32[]', space=smem, size = 0x4, offset = 0x4, fixed_abs, tag = 'smem constant byte address 0x4 - core index']
  #allocation1 [shape = 'u32[144,128]{1,0:T(1,128)}', space=vmem, size = 0x12000, scoped, tag = 'internal scratch']
  #allocation2 [shape = 'f32[36,256]{1,0:T(8,128)}', space=vmem, size = 0xa000, scoped, tag = 'scratch operand']
  %s0 = inlined_call_operand.hbm [shape: f32[2,4,256], index: 0, kind: input, shape index: {}]
  %s1 = inlined_call_operand.vmem [shape: f32[8,36], index: 1, kind: input, shape index: {}]
  %s2 = inlined_call_operand.vmem [shape: f32[8,1], index: 2, kind: input, shape index: {}]
  %s3 = inlined_call_operand.vmem [shape: f32[4,8], index: 3, kind: input, shape index: {}]
  %s4 = inlined_call_operand.vmem [shape: f32[4,1], index: 4, kind: input, shape index: {}]
  %s5 = inlined_call_operand.hbm [shape: f32[2,4,256], index: 5, kind: output, shape index: {}]
  %s6 = sld [smem:[#allocation0]]
  $region57: #{tpu_custom_call.1} parent=0
    _
  %s8 = ssub.s32 1, %s6
  %s9 = scalar_select 0, %s8, %s6
  $region1: #{tpu_custom_call.1} parent=0
    #allocation3 [shape = 'u8[8192]{0}', space=vmem, size = 0x2000, scoped, tag = 'input window, operand 0']
    #allocation4 [shape = 's32[2]{0}', space=sflag, size = 0x8, scoped, tag = 'scoped memory for tpu_custom_call.1']
    #allocation5 [shape = 's32[2]{0}', space=sflag, size = 0x8, scoped, tag = 'scoped memory for tpu_custom_call.1']
    #allocation6 [shape = 'u8[8192]{0}', space=vmem, size = 0x2000, scoped, tag = 'output window, operand 0']
    %10 = vsyncpa [#allocation4], 0
    %s11 = scalar_lea.sflag [#allocation4], 1
    %12 = vsyncpa %s11, 0
    %13 = vsyncpa [#allocation5], 0
    %s14 = scalar_lea.sflag [#allocation5], 1
    %15 = vsyncpa %s14, 0
    loop: start=0, step=1, limit=4
    $region2: #{tpu_custom_call.1} parent=1 // loop_pre_header
      _
    $region3: #{tpu_custom_call.1} parent=1 // loop_header
      %s17 = sphi 0, %s21
      %p18 = scmp.ge.s32.totalorder %s17, 4
      %s27 = sphi 0, %s29
      %s30 = sphi 0, %s27
      %s31 = sphi 0, %s30
      %s47 = sphi 0, %s31
      %s51 = sphi 0, %s51
      %s53 = sphi 0, %s51
      %s54 = sphi 0, %s53
      %s68 = sphi 0, %s54
      %s72 = sphi 0, %s72
      %s74 = sphi 0, %s72
      %s75 = sphi 0, %s74
      %s89 = sphi 0, %s75
      %s93 = sphi 0, %s93
      %s95 = sphi 0, %s93
      %s96 = sphi 0, %s95
      %s110 = sphi 0, %s96
      %s114 = sphi 0, %s114
      %s116 = sphi 0, %s114
      %s117 = sphi 0, %s116
      %s131 = sphi 0, %s117
      %s137 = sphi 0, %s139
      %s140 = sphi 0, %s137
      %s141 = sphi 0, %s140
      %s157 = sphi 0, %s141
    $region4: #{tpu_custom_call.1} parent=1 // loop_header_branch
      %20 = sbr.rel (%p18) target = $region8
    $region5: #{tpu_custom_call.1} parent=1 // loop_body
      %s22 = ssub.s32 %s17, 1
      %s23 = ssub.s32 %s17, 2
      %s24 = sadd.s32 %s17, 1
      %s25 = ssub.s32 %s17, %s24
      %p26 = scmp.eq.s32.totalorder %s25, 0
      %s28 = sadd.s32 %s27, 1
      %s29 = scalar_select %p26, %s27, %s28
      %p32 = pneg %p26
      %p33 = scmp.eq.s32.totalorder %s17, 1
      %p34 = por %p32, %p33
      %p35 = scmp.ne.s32.totalorder %s27, %s30
      %p36 = scmp.eq.s32.totalorder %s17, 0
      %p37 = por %p35, %p36
      %p38 = scmp.ne.s32.totalorder %s27, %s30
      %p39 = scmp.eq.s32.totalorder %s22, 1
      %p40 = por %p38, %p39
      %p41 = scmp.ne.s32.totalorder %s30, %s31
      %p42 = scmp.eq.s32.totalorder %s22, 0
      %p43 = por %p41, %p42
      %p44 = scmp.ne.s32.totalorder %s30, %s31
      %p45 = scmp.eq.s32.totalorder %s23, 1
      %p46 = por %p44, %p45
      %p48 = scmp.ne.s32.totalorder %s31, %s47
      %p49 = scmp.eq.s32.totalorder %s23, 0
      %p50 = por %p48, %p49
      %s52 = sadd.s32 %s51, 1
      %p55 = scmp.eq.s32.totalorder %s17, 1
      %p56 = scmp.ne.s32.totalorder %s51, %s53
      %p57 = scmp.eq.s32.totalorder %s17, 0
      %p58 = por %p56, %p57
      %p59 = scmp.ne.s32.totalorder %s51, %s53
      %p60 = scmp.eq.s32.totalorder %s22, 1
      %p61 = por %p59, %p60
      %p62 = scmp.ne.s32.totalorder %s53, %s54
      %p63 = scmp.eq.s32.totalorder %s22, 0
      %p64 = por %p62, %p63
      %p65 = scmp.ne.s32.totalorder %s53, %s54
      %p66 = scmp.eq.s32.totalorder %s23, 1
      %p67 = por %p65, %p66
      %p69 = scmp.ne.s32.totalorder %s54, %s68
      %p70 = scmp.eq.s32.totalorder %s23, 0
      %p71 = por %p69, %p70
      %s73 = sadd.s32 %s72, 1
      %p76 = scmp.eq.s32.totalorder %s17, 1
      %p77 = scmp.ne.s32.totalorder %s72, %s74
      %p78 = scmp.eq.s32.totalorder %s17, 0
      %p79 = por %p77, %p78
      %p80 = scmp.ne.s32.totalorder %s72, %s74
      %p81 = scmp.eq.s32.totalorder %s22, 1
      %p82 = por %p80, %p81
      %p83 = scmp.ne.s32.totalorder %s74, %s75
      %p84 = scmp.eq.s32.totalorder %s22, 0
      %p85 = por %p83, %p84
      %p86 = scmp.ne.s32.totalorder %s74, %s75
      %p87 = scmp.eq.s32.totalorder %s23, 1
      %p88 = por %p86, %p87
      %p90 = scmp.ne.s32.totalorder %s75, %s89
      %p91 = scmp.eq.s32.totalorder %s23, 0
      %p92 = por %p90, %p91
      %s94 = sadd.s32 %s93, 1
      %p97 = scmp.eq.s32.totalorder %s17, 1
      %p98 = scmp.ne.s32.totalorder %s93, %s95
      %p99 = scmp.eq.s32.totalorder %s17, 0
      %p100 = por %p98, %p99
      %p101 = scmp.ne.s32.totalorder %s93, %s95
      %p102 = scmp.eq.s32.totalorder %s22, 1
      %p103 = por %p101, %p102
      %p104 = scmp.ne.s32.totalorder %s95, %s96
      %p105 = scmp.eq.s32.totalorder %s22, 0
      %p106 = por %p104, %p105
      %p107 = scmp.ne.s32.totalorder %s95, %s96
      %p108 = scmp.eq.s32.totalorder %s23, 1
      %p109 = por %p107, %p108
      %p111 = scmp.ne.s32.totalorder %s96, %s110
      %p112 = scmp.eq.s32.totalorder %s23, 0
      %p113 = por %p111, %p112
      %s115 = sadd.s32 %s114, 1
      %p118 = scmp.eq.s32.totalorder %s17, 1
      %p119 = scmp.ne.s32.totalorder %s114, %s116
      %p120 = scmp.eq.s32.totalorder %s17, 0
      %p121 = por %p119, %p120
      %p122 = scmp.ne.s32.totalorder %s114, %s116
      %p123 = scmp.eq.s32.totalorder %s22, 1
      %p124 = por %p122, %p123
      %p125 = scmp.ne.s32.totalorder %s116, %s117
      %p126 = scmp.eq.s32.totalorder %s22, 0
      %p127 = por %p125, %p126
      %p128 = scmp.ne.s32.totalorder %s116, %s117
      %p129 = scmp.eq.s32.totalorder %s23, 1
      %p130 = por %p128, %p129
      %p132 = scmp.ne.s32.totalorder %s117, %s131
      %p133 = scmp.eq.s32.totalorder %s23, 0
      %p134 = por %p132, %p133
      %s135 = ssub.s32 %s17, %s24
      %p136 = scmp.eq.s32.totalorder %s135, 0
      %s138 = sadd.s32 %s137, 1
      %s139 = scalar_select %p136, %s137, %s138
      %p142 = pneg %p136
      %p143 = scmp.eq.s32.totalorder %s17, 1
      %p144 = por %p142, %p143
      %p145 = scmp.ne.s32.totalorder %s137, %s140
      %p146 = scmp.eq.s32.totalorder %s17, 0
      %p147 = por %p145, %p146
      %p148 = scmp.ne.s32.totalorder %s137, %s140
      %p149 = scmp.eq.s32.totalorder %s22, 1
      %p150 = por %p148, %p149
      %p151 = scmp.ne.s32.totalorder %s140, %s141
      %p152 = scmp.eq.s32.totalorder %s22, 0
      %p153 = por %p151, %p152
      %p154 = scmp.ne.s32.totalorder %s140, %s141
      %p155 = scmp.eq.s32.totalorder %s23, 1
      %p156 = por %p154, %p155
      %p158 = scmp.ne.s32.totalorder %s141, %s157
      %p159 = scmp.eq.s32.totalorder %s23, 0
      %p160 = por %p158, %p159
      %p161 = scmp.le.s32.totalorder 1, %s17
      %p162 = scmp.lt.s32.totalorder %s17, 3
      %p163 = pnand %p161, %p162
      %p164 = pneg %p163
      // Predicated region
      $region9: #{tpu_custom_call.1} parent=5 // pred_check
        _
      $region10: #{tpu_custom_call.1} parent=5 // pred_check_branch
        %166 = sbr.rel (%p163) target = $region12
      $region11: #{tpu_custom_call.1} parent=5 // pred_region
        %s167 = ssub.s32 %s17, 1
        // Predicated region
        $region13: #{tpu_custom_call.1} parent=11 // pred_check
          %p168 = pneg %p64
        $region14: #{tpu_custom_call.1} parent=11 // pred_check_branch
          %170 = sbr.rel (%p168) target = $region16
        $region15: #{tpu_custom_call.1} parent=11 // pred_region
          _
        $region16: #{tpu_custom_call.1} parent=11 // pred_fallthru
          _
        // Predicated region
        $region17: #{tpu_custom_call.1} parent=11 // pred_check
          %p171 = pneg %p85
        $region18: #{tpu_custom_call.1} parent=11 // pred_check_branch
          %173 = sbr.rel (%p171) target = $region20
        $region19: #{tpu_custom_call.1} parent=11 // pred_region
          _
        $region20: #{tpu_custom_call.1} parent=11 // pred_fallthru
          _
        // Predicated region
        $region21: #{tpu_custom_call.1} parent=11 // pred_check
          %p174 = pneg %p106
        $region22: #{tpu_custom_call.1} parent=11 // pred_check_branch
          %176 = sbr.rel (%p174) target = $region24
        $region23: #{tpu_custom_call.1} parent=11 // pred_region
          _
        $region24: #{tpu_custom_call.1} parent=11 // pred_fallthru
          _
        // Predicated region
        $region25: #{tpu_custom_call.1} parent=11 // pred_check
          %p177 = pneg %p127
        $region26: #{tpu_custom_call.1} parent=11 // pred_check_branch
          %179 = sbr.rel (%p177) target = $region28
        $region27: #{tpu_custom_call.1} parent=11 // pred_region
          _
        $region28: #{tpu_custom_call.1} parent=11 // pred_fallthru
          _
      $region12: #{tpu_custom_call.1} parent=5 // pred_fallthru
        _
      %p180 = scmp.lt.s32.totalorder %s17, 2
      // Predicated region
      $region29: #{tpu_custom_call.1} parent=5 // pred_check
        %p181 = pneg %p180
      $region30: #{tpu_custom_call.1} parent=5 // pred_check_branch
        %183 = sbr.rel (%p181) target = $region32
      $region31: #{tpu_custom_call.1} parent=5 // pred_region
        // Predicated region
        $region33: #{tpu_custom_call.1} parent=31 // pred_check
          %p184 = pneg %p37
        $region34: #{tpu_custom_call.1} parent=31 // pred_check_branch
          %186 = sbr.rel (%p184) target = $region36
        $region35: #{tpu_custom_call.1} parent=31 // pred_region
          %s187 = sand.u32 %s27, 1
          %s188 = scalar_lea.sflag [#allocation4], %s187
          %s189 = sand.u32 %s27, 1
          %s190 = smul.addr %s189, 8
          %s191 = scalar_lea.vmem [#allocation3], %s190
          %s193 = ssub.s32 128, 128
          %194 = vsyncadd %s188, %s193
          %s195 = smul.addr %s17, 2
          %s196 = smul.addr %s195, 64
          %s197 = scalar_lea.hbm %s0, %s196
          %s199 = sshll.u32 %s191, 4
          %s200 = int_to_ptr.vmem [resolvable:$true] %s199
          %202 = dma.hbm_to_vmem [thread:$0]  %s197, 128, %s200, %s188
        $region36: #{tpu_custom_call.1} parent=31 // pred_fallthru
          _
      $region32: #{tpu_custom_call.1} parent=5 // pred_fallthru
        _
      %p203 = scmp.le.s32.totalorder 1, %s17
      %p204 = scmp.lt.s32.totalorder %s17, 3
      %p205 = pnand %p203, %p204
      %p206 = pneg %p205
      // Predicated region
      $region37: #{tpu_custom_call.1} parent=5 // pred_check
        _
      $region38: #{tpu_custom_call.1} parent=5 // pred_check_branch
        %208 = sbr.rel (%p205) target = $region40
      $region39: #{tpu_custom_call.1} parent=5 // pred_region
        %s209 = ssub.s32 %s17, 1
        %s210 = sand.u32 %s30, 1
        %s211 = scalar_lea.sflag [#allocation4], %s210
        %s212 = sand.u32 %s30, 1
        %s213 = smul.addr %s212, 8
        %s214 = scalar_lea.vmem [#allocation3], %s213
        // Predicated region
        $region41: #{tpu_custom_call.1} parent=39 // pred_check
          %p215 = pneg %p43
        $region42: #{tpu_custom_call.1} parent=39 // pred_check_branch
          %217 = sbr.rel (%p215) target = $region44
        $region43: #{tpu_custom_call.1} parent=39 // pred_region
          %218 = dma.done %s211, 128
        $region44: #{tpu_custom_call.1} parent=39 // pred_fallthru
          _
        %s219 = sand.u32 %s30, 1
        %s220 = scalar_lea.sflag [#allocation4], %s219
        %s221 = sand.u32 %s30, 1
        %s222 = smul.addr %s221, 8
        %s223 = scalar_lea.vmem [#allocation3], %s222
        %p224 = pneg %p43
        %p225 = pneg %p40
        %p226 = pneg %p64
        %p227 = pneg %p61
        %p228 = pneg %p85
        %p229 = pneg %p82
        %p230 = pneg %p106
        %p231 = pneg %p103
        %p232 = pneg %p127
        %p233 = pneg %p124
        %p234 = pneg %p153
        %p235 = pneg %p150
        %s236 = sand.u32 %s140, 1
        %s237 = scalar_lea.sflag [#allocation5], %s236
        %s238 = sand.u32 %s140, 1
        %s239 = smul.addr %s238, 8
        %s240 = scalar_lea.vmem [#allocation6], %s239
        %v241 = vld [vmem:[%s214] sm:$0xff]
        %v242 = vmax.f32 %v241, 0.0
        %v244 = vcombine.high %v242, %v242
        %245 = vrot.lane.b32.xlu0 %v242, 17
        %v246 = vpop.permute.xlu0 %245
        %247 = vrot.lane.b32.xlu0 %v244, 17
        %v248 = vpop.permute.xlu0 %247
        %vm249 = vcmask 138240
        %v250 = vsel %vm249, %v246, %v248
        %v254 = vsel %vm249, 0.0, %v246
        %v255 = vsel %vm249, %v248, 0.0
        %v256 = vlaneseq
        %v257 = vand.u32 %v256, 127
        %v258 = vadd.s32 %v257, 128
        %vm259 = vcmp.lt.s32.totalorder %v257, 0
        %v260 = vsub.s32 0, %v257
        %v261 = vsel %vm259, %v260, %v257
        %v262 = vshrl.u32 %v261, 4
        %v263 = vand.u32 %v261, 15
        %v264 = vsub.s32 0, %v263
        %v265 = vsel %vm259, %v264, %v263
        %vm266 = vcmp.lt.s32.totalorder %v258, 0
        %v267 = vsub.s32 0, %v258
        %v268 = vsel %vm266, %v267, %v258
        %v269 = vshrl.u32 %v268, 4
        %v270 = vand.u32 %v268, 15
        %v271 = vsub.s32 0, %v270
        %v272 = vsel %vm266, %v271, %v270
        %vm273 = vcmp.ne.s32.totalorder %v265, 0
        %vm274 = vcmp.ne.s32.totalorder %v272, 0
        %vm275 = vcmp.lt.s32.totalorder %v265, 0
        %vm276 = vcmp.lt.s32.totalorder %v272, 0
        %vm277 = vmand %vm275, %vm273
        %vm278 = vmand %vm276, %vm274
        %v279 = vadd.s32 %v265, 16
        %v280 = vadd.s32 %v272, 16
        %v281 = vsel %vm277, %v279, %v265
        %v282 = vsel %vm278, %v280, %v272
        %vm283 = vcmp.ge.s32.totalorder %v281, 1
        %vm284 = vcmp.ge.s32.totalorder %v282, 1
        %vm285 = vcmp.lt.s32.totalorder %v281, 15
        %vm286 = vcmp.lt.s32.totalorder %v282, 15
        %v287 = vsel %vm283, 1, 0
        %v288 = vsel %vm284, 1, 0
        %vm289 = vcmp.eq.s32.totalorder %v287, 1
        %vm290 = vcmp.eq.s32.totalorder %v288, 1
        %v291 = vsel %vm289, %v254, 0.0
        %v292 = vsel %vm290, %v250, 0.0
        %293 = vst [vmem:[#allocation2] sm:$0xf] %v291
        %294 = vst [vmem:[#allocation2 + $0x8] sm:$0xf] %v292
        %v297 = vrot.slane %v254, 4
        %v298 = vrot.slane %v250, 4
        %v299 = vrot.slane %v255, 4
        %300 = vrot.lane.b32.xlu0 %v297, 127
        %v301 = vpop.permute.xlu0 %300
        %302 = vrot.lane.b32.xlu0 %v298, 127
        %v303 = vpop.permute.xlu0 %302
        %304 = vrot.lane.b32.xlu0 %v299, 127
        %v305 = vpop.permute.xlu0 %304
        %vm306 = vcmask 1039360
        %v307 = vsel %vm306, %v301, %v303
        %v308 = vsel %vm306, %v303, %v305
        %311 = vst [vmem:[#allocation2] sm:$0xf0] %v307
        %312 = vst [vmem:[#allocation2 + $0x8] sm:$0xf0] %v308
        %v313 = vsel %vm285, 1, 0
        %v314 = vsel %vm286, 1, 0
        %vm315 = vcmp.eq.s32.totalorder %v313, 1
        %vm316 = vcmp.eq.s32.totalorder %v314, 1
        %317 = vrot.lane.b32.xlu0 %v254, 126
        %v318 = vpop.permute.xlu0 %317
        %319 = vrot.lane.b32.xlu0 %v250, 126
        %v320 = vpop.permute.xlu0 %319
        %321 = vrot.lane.b32.xlu0 %v255, 126
        %v322 = vpop.permute.xlu0 %321
        %vm323 = vcmask 1031168
        %v324 = vsel %vm323, %v318, %v320
        %v325 = vsel %vm323, %v320, %v322
        %v328 = vsel %vm315, %v324, 0.0
        %v329 = vsel %vm316, %v325, 0.0
        %330 = vst [vmem:[#allocation2 + $0x10] sm:$0xf] %v328
        %331 = vst [vmem:[#allocation2 + $0x18] sm:$0xf] %v329
        %332 = vrot.lane.b32.xlu0 %v254, 112
        %v333 = vpop.permute.xlu0 %332
        %334 = vrot.lane.b32.xlu0 %v250, 112
        %v335 = vpop.permute.xlu0 %334
        %336 = vrot.lane.b32.xlu0 %v255, 112
        %v337 = vpop.permute.xlu0 %336
        %vm338 = vcmask 916480
        %v339 = vsel %vm338, %v333, %v335
        %v340 = vsel %vm338, %v335, %v337
        %v343 = vsel %vm289, %v339, 0.0
        %v344 = vsel %vm290, %v340, 0.0
        %v347 = vrot.slane %v343, 4
        %v348 = vrot.slane %v344, 4
        %351 = vst [vmem:[#allocation2 + $0x10] sm:$0xf0] %v347
        %352 = vst [vmem:[#allocation2 + $0x18] sm:$0xf0] %v348
        %353 = vrot.lane.b32.xlu0 %v254, 111
        %v354 = vpop.permute.xlu0 %353
        %355 = vrot.lane.b32.xlu0 %v250, 111
        %v356 = vpop.permute.xlu0 %355
        %357 = vrot.lane.b32.xlu0 %v255, 111
        %v358 = vpop.permute.xlu0 %357
        %vm359 = vcmask 908288
        %v360 = vsel %vm359, %v354, %v356
        %v361 = vsel %vm359, %v356, %v358
        %364 = vst [vmem:[#allocation2 + $0x20] sm:$0xf] %v360
        %365 = vst [vmem:[#allocation2 + $0x28] sm:$0xf] %v361
        %366 = vrot.lane.b32.xlu0 %v254, 110
        %v367 = vpop.permute.xlu0 %366
        %368 = vrot.lane.b32.xlu0 %v250, 110
        %v369 = vpop.permute.xlu0 %368
        %370 = vrot.lane.b32.xlu0 %v255, 110
        %v371 = vpop.permute.xlu0 %370
        %vm372 = vcmask 900096
        %v373 = vsel %vm372, %v367, %v369
        %v374 = vsel %vm372, %v369, %v371
        %v377 = vsel %vm315, %v373, 0.0
        %v378 = vsel %vm316, %v374, 0.0
        %v381 = vrot.slane %v377, 4
        %v382 = vrot.slane %v378, 4
        %385 = vst [vmem:[#allocation2 + $0x20] sm:$0xf0] %v381
        %386 = vst [vmem:[#allocation2 + $0x28] sm:$0xf0] %v382
        %387 = vrot.lane.b32.xlu0 %v254, 96
        %v388 = vpop.permute.xlu0 %387
        %389 = vrot.lane.b32.xlu0 %v250, 96
        %v390 = vpop.permute.xlu0 %389
        %391 = vrot.lane.b32.xlu0 %v255, 96
        %v392 = vpop.permute.xlu0 %391
        %vm393 = vcmask 785408
        %v394 = vsel %vm393, %v388, %v390
        %v395 = vsel %vm393, %v390, %v392
        %v398 = vsel %vm289, %v394, 0.0
        %v399 = vsel %vm290, %v395, 0.0
        %400 = vst [vmem:[#allocation2 + $0x30] sm:$0xf] %v398
        %401 = vst [vmem:[#allocation2 + $0x38] sm:$0xf] %v399
        %402 = vrot.lane.b32.xlu0 %v297, 95
        %v403 = vpop.permute.xlu0 %402
        %404 = vrot.lane.b32.xlu0 %v298, 95
        %v405 = vpop.permute.xlu0 %404
        %406 = vrot.lane.b32.xlu0 %v299, 95
        %v407 = vpop.permute.xlu0 %406
        %vm408 = vcmask 777216
        %v409 = vsel %vm408, %v403, %v405
        %v410 = vsel %vm408, %v405, %v407
        %413 = vst [vmem:[#allocation2 + $0x30] sm:$0xf0] %v409
        %414 = vst [vmem:[#allocation2 + $0x38] sm:$0xf0] %v410
        %415 = vrot.lane.b32.xlu0 %v254, 94
        %v416 = vpop.permute.xlu0 %415
        %417 = vrot.lane.b32.xlu0 %v250, 94
        %v418 = vpop.permute.xlu0 %417
        %419 = vrot.lane.b32.xlu0 %v255, 94
        %v420 = vpop.permute.xlu0 %419
        %vm421 = vcmask 769024
        %v422 = vsel %vm421, %v416, %v418
        %v423 = vsel %vm421, %v418, %v420
        %v426 = vsel %vm315, %v422, 0.0
        %v427 = vsel %vm316, %v423, 0.0
        %428 = vst [vmem:[#allocation2 + $0x40] sm:$0xf] %v426
        %429 = vst [vmem:[#allocation2 + $0x48] sm:$0xf] %v427
        %v430 = vld [vmem:[#allocation2] sm:$0xff]
        %v431 = vld [vmem:[#allocation2 + $0x8] sm:$0xff]
        %v432 = vld [vmem:[#allocation2 + $0x10] sm:$0xff]
        %v433 = vld [vmem:[#allocation2 + $0x18] sm:$0xff]
        %v434 = vld [vmem:[#allocation2 + $0x20] sm:$0xff]
        %v435 = vld [vmem:[#allocation2 + $0x28] sm:$0xff]
        %v436 = vld [vmem:[#allocation2 + $0x30] sm:$0xff]
        %v437 = vld [vmem:[#allocation2 + $0x38] sm:$0xff]
        %v438 = vld [vmem:[#allocation2 + $0x40] sm:$0xf]
        %v439 = vld [vmem:[#allocation2 + $0x48] sm:$0xf]
        %v440 = vld [vmem:[%s1] sm:$0xff]
        %v441 = vld [vmem:[%s2] sm:$0xff]
        %443 = vset.pattern.permute.xlu0 0
        %444 = vperm.xlu0 %443, %v441
        %v445 = vpop.permute.xlu0 %444
        %vm447 = vcmask 293888
        %v449 = vsel %vm447, %v440, 0
        %vm451 = vcmask 1043456
        %v453 = vsel %vm451, %v438, 0
        %v456 = vsel %vm451, %v439, 0
        %458 = vmatprep.subr.mxu0 0.0
        %459 = vmatpush1.msra.mxu0 0.0
        %460 = vmatprep.subr.mxu0 0.0
        %461 = vmatpush1.msra.mxu0 0.0
        %462 = vmatprep.subr.mxu0 0.0
        %463 = vmatpush1.msra.mxu0 0.0
        %464 = vmatprep.subr.mxu0 0.0
        %465 = vmatpush1.msra.mxu0 0.0
        %466 = vmatprep.subr.mxu0 0.0
        %467 = vmatpush1.msra.mxu0 0.0
        %468 = vmatprep.subr.mxu0 0.0
        %469 = vmatpush1.msra.mxu0 0.0
        %470 = vmatprep.subr.mxu0 0.0
        %471 = vmatpush1.msra.mxu0 0.0
        %472 = vmatprep.subr.mxu0 0.0
        %473 = vmatpush1.msra.mxu0 0.0
        %474 = vmatprep.subr.mxu0 0.0
        %475 = vmatpush1.msra.mxu0 0.0
        %476 = vmatprep.subr.mxu0 0.0
        %477 = vmatpush1.msra.mxu0 0.0
        %478 = vmatprep.subr.mxu0 0.0
        %479 = vmatpush1.msra.mxu0 0.0
        %480 = vmatprep.subr.mxu0 %v456
        %481 = vmatpush1.msra.mxu0 %v453
        %482 = vmatprep.subr.mxu0 %v437
        %483 = vmatpush1.msra.mxu0 %v436
        %484 = vmatprep.subr.mxu0 %v435
        %485 = vmatpush1.msra.mxu0 %v434
        %486 = vmatprep.subr.mxu0 %v433
        %487 = vmatpush1.msra.mxu0 %v432
        %488 = vmatprep.subr.mxu0 %v431
        %489 = vmatpush1.msra.mxu0 %v430
        %490 = vmatprep.subr.mxu0 0.0
        %491 = vmatpush2.msra.mxu0 0.0
        %492 = vmatprep.subr.mxu0 0.0
        %493 = vmatpush2.msra.mxu0 0.0
        %494 = vmatprep.subr.mxu0 0.0
        %495 = vmatpush2.msra.mxu0 0.0
        %496 = vmatprep.subr.mxu0 0.0
        %497 = vmatpush2.msra.mxu0 0.0
        %498 = vmatprep.subr.mxu0 0.0
        %499 = vmatpush2.msra.mxu0 0.0
        %500 = vmatprep.subr.mxu0 0.0
        %501 = vmatpush2.msra.mxu0 0.0
        %502 = vmatprep.subr.mxu0 0.0
        %503 = vmatpush2.msra.mxu0 0.0
        %504 = vmatprep.subr.mxu0 0.0
        %505 = vmatpush2.msra.mxu0 0.0
        %506 = vmatprep.subr.mxu0 0.0
        %507 = vmatpush2.msra.mxu0 0.0
        %508 = vmatprep.subr.mxu0 0.0
        %509 = vmatpush2.msra.mxu0 0.0
        %510 = vmatprep.subr.mxu0 0.0
        %511 = vmatpush2.msra.mxu0 0.0
        %512 = vmatprep.subr.mxu0 0.0
        %513 = vmatpush2.msra.mxu0 0.0
        %514 = vmatprep.subr.mxu0 0.0
        %515 = vmatpush2.msra.mxu0 0.0
        %516 = vmatprep.subr.mxu0 0.0
        %517 = vmatpush2.msra.mxu0 0.0
        %518 = vmatprep.subr.mxu0 0.0
        %519 = vmatpush2.msra.mxu0 0.0
        %520 = vmatprep.subr.mxu0 0.0
        %521 = vmatpush2.msra.mxu0 0.0
        %522 = vmatprep.mubr.f32.mxu0 0.0
        %523 = vmatmul.mubr.f32.gmra.mxu0 %v449
        %v524 = vpop.f32.mrf.mxu0
        %v525 = vadd.f32 %v445, %v524
        %v526 = vpop.f32.mrf.mxu0
        %v527 = vadd.f32 %v445, %v526
        %528 = vdwg.mxu0
        %v529 = vmax.f32 %v525, 0.0
        %v530 = vmax.f32 %v527, 0.0
        %v531 = vld [vmem:[%s3] sm:$0xf]
        %v532 = vld [vmem:[%s4] sm:$0xf]
        %534 = vset.pattern.permute.xlu0 0
        %535 = vperm.xlu0 %534, %v532
        %v536 = vpop.permute.xlu0 %535
        %vm538 = vcmask 64512
        %v540 = vsel %vm538, %v531, 0
        %542 = vmatprep.subr.mxu0 0.0
        %543 = vmatpush1.msra.mxu0 0.0
        %544 = vmatprep.subr.mxu0 0.0
        %545 = vmatpush1.msra.mxu0 0.0
        %546 = vmatprep.subr.mxu0 0.0
        %547 = vmatpush1.msra.mxu0 0.0
        %548 = vmatprep.subr.mxu0 0.0
        %549 = vmatpush1.msra.mxu0 0.0
        %550 = vmatprep.subr.mxu0 0.0
        %551 = vmatpush1.msra.mxu0 0.0
        %552 = vmatprep.subr.mxu0 0.0
        %553 = vmatpush1.msra.mxu0 0.0
        %554 = vmatprep.subr.mxu0 0.0
        %555 = vmatpush1.msra.mxu0 0.0
        %556 = vmatprep.subr.mxu0 0.0
        %557 = vmatpush1.msra.mxu0 0.0
        %558 = vmatprep.subr.mxu0 0.0
        %559 = vmatpush1.msra.mxu0 0.0
        %560 = vmatprep.subr.mxu0 0.0
        %561 = vmatpush1.msra.mxu0 0.0
        %562 = vmatprep.subr.mxu0 0.0
        %563 = vmatpush1.msra.mxu0 0.0
        %564 = vmatprep.subr.mxu0 0.0
        %565 = vmatpush1.msra.mxu0 0.0
        %566 = vmatprep.subr.mxu0 0.0
        %567 = vmatpush1.msra.mxu0 0.0
        %568 = vmatprep.subr.mxu0 0.0
        %569 = vmatpush1.msra.mxu0 0.0
        %570 = vmatprep.subr.mxu0 0.0
        %571 = vmatpush1.msra.mxu0 0.0
        %572 = vmatprep.subr.mxu0 %v530
        %573 = vmatpush1.msra.mxu0 %v529
        %574 = vmatprep.subr.mxu0 0.0
        %575 = vmatpush2.msra.mxu0 0.0
        %576 = vmatprep.subr.mxu0 0.0
        %577 = vmatpush2.msra.mxu0 0.0
        %578 = vmatprep.subr.mxu0 0.0
        %579 = vmatpush2.msra.mxu0 0.0
        %580 = vmatprep.subr.mxu0 0.0
        %581 = vmatpush2.msra.mxu0 0.0
        %582 = vmatprep.subr.mxu0 0.0
        %583 = vmatpush2.msra.mxu0 0.0
        %584 = vmatprep.subr.mxu0 0.0
        %585 = vmatpush2.msra.mxu0 0.0
        %586 = vmatprep.subr.mxu0 0.0
        %587 = vmatpush2.msra.mxu0 0.0
        %588 = vmatprep.subr.mxu0 0.0
        %589 = vmatpush2.msra.mxu0 0.0
        %590 = vmatprep.subr.mxu0 0.0
        %591 = vmatpush2.msra.mxu0 0.0
        %592 = vmatprep.subr.mxu0 0.0
        %593 = vmatpush2.msra.mxu0 0.0
        %594 = vmatprep.subr.mxu0 0.0
        %595 = vmatpush2.msra.mxu0 0.0
        %596 = vmatprep.subr.mxu0 0.0
        %597 = vmatpush2.msra.mxu0 0.0
        %598 = vmatprep.subr.mxu0 0.0
        %599 = vmatpush2.msra.mxu0 0.0
        %600 = vmatprep.subr.mxu0 0.0
        %601 = vmatpush2.msra.mxu0 0.0
        %602 = vmatprep.subr.mxu0 0.0
        %603 = vmatpush2.msra.mxu0 0.0
        %604 = vmatprep.subr.mxu0 0.0
        %605 = vmatpush2.msra.mxu0 0.0
        %606 = vmatprep.mubr.f32.mxu0 0.0
        %607 = vmatmul.mubr.f32.gmra.mxu0 %v540
        %v608 = vpop.f32.mrf.mxu0
        %v609 = vadd.f32 %v536, %v608
        %v610 = vpop.f32.mrf.mxu0
        %v611 = vadd.f32 %v536, %v610
        %612 = vdwg.mxu0
        %v615 = vcombine.low %v609, %v611
        %v617 = vadd.f32 %v241, %v615
        %618 = vst [vmem:[%s240] sm:$0xff] %v617
        %s619 = sand.u32 %s140, 1
        %s620 = scalar_lea.sflag [#allocation5], %s619
        %s621 = sand.u32 %s140, 1
        %s622 = smul.addr %s621, 8
        %s623 = scalar_lea.vmem [#allocation6], %s622
        // Predicated region
        $region45: #{tpu_custom_call.1} parent=39 // pred_check
          %p624 = pneg %p150
        $region46: #{tpu_custom_call.1} parent=39 // pred_check_branch
          %626 = sbr.rel (%p624) target = $region48
        $region47: #{tpu_custom_call.1} parent=39 // pred_region
          %s628 = ssub.s32 128, 128
          %629 = vsyncadd %s620, %s628
          %s630 = smul.addr %s22, 2
          %s631 = smul.addr %s630, 64
          %s632 = scalar_lea.hbm %s5, %s631
          %s634 = sshll.u32 %s623, 4
          %s635 = int_to_ptr.vmem [resolvable:$true] %s634
          %637 = dma.vmem_to_hbm [thread:$0]  %s635, 128, %s632, %s620
        $region48: #{tpu_custom_call.1} parent=39 // pred_fallthru
          _
      $region40: #{tpu_custom_call.1} parent=5 // pred_fallthru
        _
      %p638 = scmp.le.s32.totalorder 2, %s17
      // Predicated region
      $region49: #{tpu_custom_call.1} parent=5 // pred_check
        %p639 = pneg %p638
      $region50: #{tpu_custom_call.1} parent=5 // pred_check_branch
        %641 = sbr.rel (%p639) target = $region52
      $region51: #{tpu_custom_call.1} parent=5 // pred_region
        %s642 = ssub.s32 %s17, 2
        // Predicated region
        $region53: #{tpu_custom_call.1} parent=51 // pred_check
          %p643 = pneg %p156
        $region54: #{tpu_custom_call.1} parent=51 // pred_check_branch
          %645 = sbr.rel (%p643) target = $region56
        $region55: #{tpu_custom_call.1} parent=51 // pred_region
          %s646 = sand.u32 %s141, 1
          %s647 = scalar_lea.sflag [#allocation5], %s646
          %s648 = sand.u32 %s141, 1
          %s649 = smul.addr %s648, 8
          %s650 = scalar_lea.vmem [#allocation6], %s649
          %651 = dma.done %s647, 128
        $region56: #{tpu_custom_call.1} parent=51 // pred_fallthru
          _
      $region52: #{tpu_custom_call.1} parent=5 // pred_fallthru
        _
    $region6: #{tpu_custom_call.1} parent=1 // loop_footer
      %s21 = sadd.s32 1, %s17
    $region7: #{tpu_custom_call.1} parent=1 // loop_footer_branch
      %16 = sbr.rel target = $region3
    $region8: #{tpu_custom_call.1} parent=1 // loop_exit
      _
    %652 = vsyncpa [#allocation4], 1
    %s653 = scalar_lea.sflag [#allocation4], 1
    %654 = vsyncpa %s653, 1
    %655 = vsyncpa [#allocation5], 1
    %s656 = scalar_lea.sflag [#allocation5], 1
    %657 = vsyncpa %s656, 1

</llo_original>
